<compile_context>
chip_gen: v7x
topology: tpu7x:2x2x1
jax: 0.10.0
libtpu: 0.0.40
codegen_flags: <defaults>
</compile_context>

<pallas_src>
import functools

import jax
import jax.numpy as jnp
from jax.experimental import pallas as pl
from jax.experimental.pallas import tpu as pltpu


def calinn_kernel(b_ref, wsel_ref, x_ref, o_ref):
    """Collapsed CaliNN forward on one block of packed rows.

    b_ref:    (1,)      f32 SMEM  -- collapsed bias
    wsel_ref: (128, 32) f32 VMEM  -- kron(I_32, w_eff): folds the 4-wide dot of
                                     32 samples packed into one 128-lane row
    x_ref:    (TR, 128) VMEM      -- 32 samples x 4 features per row (lane-dense)
    o_ref:    (TR, 32)  VMEM      -- one output per packed sample
    """
    x = x_ref[...].astype(jnp.float32)                      # accumulate in f32
    y = jnp.dot(x, wsel_ref[...], preferred_element_type=jnp.float32)
    o_ref[...] = (y + b_ref[0]).astype(o_ref.dtype)


def collapse_params(params):
    """Fold the 4 affine layers into a single (4,) weight + (1,) bias (exact)."""
    (w1, b1), (w2, b2), (w3, b3), (w4, b4) = params
    w_eff = w1 @ w2 @ w3 @ w4                              # (4, 1)
    b_eff = ((b1 @ w2 + b2) @ w3 + b3) @ w4 + b4           # (1, 1)
    return (w_eff.reshape(4).astype(jnp.float32),
            b_eff.reshape(1).astype(jnp.float32))


def _round_up(v, m):
    return ((v + m - 1) // m) * m


@functools.partial(jax.jit, static_argnames=("block_rows",))
def calinn_forward(x, params, *, block_rows=4096):
    """x: (B, 4) float32.  params: list of (W_t, b), W_t shaped (in, out), b (1, out)."""
    B = x.shape[0]
    w_eff, b_eff = collapse_params(params)                  # (4,), (1,)

    # Constant folded-weight/selection matrix: one MXU pass handles 32 samples
    # per 128-lane input row.  W_sel[4*j + k, j] = w_eff[k].
    w_sel = jnp.kron(jnp.eye(32, dtype=jnp.float32), w_eff.reshape(4, 1))   # (128, 32)

    # Pack 32 samples (4 features each) per 128-lane row.  For row-major (B, 4)
    # data this reshape is a free bitcast; a pad copy happens only when
    # B % 32 != 0 (at most 31 extra rows).
    B32 = _round_up(B, 32)
    if B32 != B:
        x = jnp.pad(x, ((0, B32 - B), (0, 0)))
    R = B32 // 32
    x128 = x.reshape(R, 128)

    # Row-block size: big enough to amortize per-step overhead (~2 MiB/step at
    # 4096 rows) but capped so the grid has >= 2 steps (v7x has 2 TensorCores);
    # must be a multiple of 8 sublanes (or equal to the full extent R).
    if R <= 8:
        tr = R
    else:
        tr = min(block_rows, max(8, _round_up((R + 1) // 2, 8)))
    grid = (pl.cdiv(R, tr),)

    out = pl.pallas_call(
        calinn_kernel,
        out_shape=jax.ShapeDtypeStruct((R, 32), x.dtype),
        grid=grid,
        in_specs=[
            pl.BlockSpec(memory_space=pltpu.MemorySpace.SMEM),   # b_eff (1,)
            pl.BlockSpec((128, 32), lambda i: (0, 0)),           # w_sel (stays resident)
            pl.BlockSpec((tr, 128), lambda i: (i, 0)),           # x rows (lane-dense)
        ],
        out_specs=pl.BlockSpec((tr, 32), lambda i: (i, 0)),
        compiler_params=pltpu.CompilerParams(
            dimension_semantics=("parallel",),
        ),
    )(b_eff, w_sel, x128)

    # (R, 32) -> (B32, 1) is a free bitcast; only the tiny [:B] tail slice copies.
    return out.reshape(B32, 1)[:B]


def init_params(key):
    """Deterministic init mimicking nn.Linear's uniform(-1/sqrt(fan_in), 1/sqrt(fan_in))."""
    dims = [(4, 5), (5, 5), (5, 5), (5, 1)]
    params = []
    for (fan_in, fan_out) in dims:
        key, kw, kb = jax.random.split(key, 3)
        bound = 1.0 / jnp.sqrt(fan_in)
        # Stored transposed relative to PyTorch: (in, out), so forward is x @ W_t + b.
        w_t = jax.random.uniform(kw, (fan_in, fan_out), jnp.float32, -bound, bound)
        b = jax.random.uniform(kb, (1, fan_out), jnp.float32, -bound, bound)
        params.append((w_t, b))
    return params


def reference_forward(x, params):
    h = x
    for (w_t, b) in params:
        h = h @ w_t + b
    return h


if __name__ == "__main__":
    key = jax.random.PRNGKey(0)
    key, kx = jax.random.split(key)
    params = init_params(key)

    # Tolerance notes: collapsing the affine chain reassociates FP ops (~1e-6
    # rel), and the f32 MXU dot may execute as reduced-precision bf16 passes on
    # some generations; 5e-3 absolute still catches any structural/indexing bug
    # (those produce O(0.1) errors) while being robust to both effects.
    ATOL, RTOL = 5e-3, 1e-3

    # Small shape consistent with the module (Linear(4, ...)): batch=8, features=4.
    B = 8
    x = jax.random.normal(kx, (B, 4), jnp.float32)
    out = jax.block_until_ready(calinn_forward(x, params))
    ref = reference_forward(x, params)
    assert out.shape == (B, 1), out.shape
    assert jnp.allclose(out, ref, atol=ATOL, rtol=RTOL), float(jnp.max(jnp.abs(out - ref)))

    # Non-multiple-of-32 batch: exercises the small tail pad, a 2-step grid,
    # and the ragged last row-block.
    B2 = 300
    key, kx2 = jax.random.split(key)
    x2 = jax.random.normal(kx2, (B2, 4), jnp.float32)
    out2 = jax.block_until_ready(calinn_forward(x2, params))
    ref2 = reference_forward(x2, params)
    assert out2.shape == (B2, 1), out2.shape
    assert jnp.allclose(out2, ref2, atol=ATOL, rtol=RTOL), float(jnp.max(jnp.abs(out2 - ref2)))

    # Larger multiple-of-32 batch with a small row block: multi-step grid with
    # the resident weight block re-used across steps (no pad, no transpose).
    B3 = 2048
    key, kx3 = jax.random.split(key)
    x3 = jax.random.normal(kx3, (B3, 4), jnp.float32)
    out3 = jax.block_until_ready(calinn_forward(x3, params, block_rows=16))
    ref3 = reference_forward(x3, params)
    assert out3.shape == (B3, 1), out3.shape
    assert jnp.allclose(out3, ref3, atol=ATOL, rtol=RTOL), float(jnp.max(jnp.abs(out3 - ref3)))

    print("KERNEL_OK")
</pallas_src>

<mosaic_0001>
module attributes {stable_mosaic.version = 11 : i64} {
  func.func @calinn_kernel(%arg0: i32, %arg1: memref<1xf32, #tpu.memory_space<smem>>, %arg2: memref<128x32xf32, #tpu.memory_space<vmem>>, %arg3: memref<1x128xf32, #tpu.memory_space<vmem>>, %arg4: memref<1x32xf32, #tpu.memory_space<vmem>>) attributes {dimension_semantics = [#tpu.dimension_semantics<parallel>], iteration_bounds = array<i64: 1>, scalar_prefetch = 0 : i64, scratch_operands = 0 : i64, tpu.core_type = #tpu.core_type<tc>, window_params = [{transform_indices = @transform_0, window_bounds = array<i64: 1>}, {pipeline_mode = #tpu.pipeline_mode<synchronous>, transform_indices = @transform_1, window_bounds = array<i64: 128, 32>}, {transform_indices = @transform_2, window_bounds = array<i64: 1, 128>}, {transform_indices = @transform_3, window_bounds = array<i64: 1, 32>}]} {
    %c0 = arith.constant 0 : index
    %c0_0 = arith.constant 0 : index
    %0 = vector.load %arg3[%c0, %c0_0] : memref<1x128xf32, #tpu.memory_space<vmem>>, vector<1x128xf32>
    %c0_1 = arith.constant 0 : index
    %c0_2 = arith.constant 0 : index
    %1 = vector.load %arg2[%c0_1, %c0_2] : memref<128x32xf32, #tpu.memory_space<vmem>>, vector<128x32xf32>
    %cst = arith.constant dense<0.000000e+00> : vector<1x32xf32>
    %2 = tpu.matmul %0, %1, %cst {dimension_numbers = #tpu.dot_dimension_numbers<[1], [0], [0], [1], [0, 0, 1, 1], [], []>} : vector<1x128xf32>, vector<128x32xf32>, vector<1x32xf32> -> vector<1x32xf32>
    %c0_3 = arith.constant 0 : index
    %3 = memref.load %arg1[%c0_3] : memref<1xf32, #tpu.memory_space<smem>>
    %4 = vector.broadcast %3 : f32 to vector<1x32xf32>
    %5 = arith.addf %2, %4 : vector<1x32xf32>
    %c0_4 = arith.constant 0 : index
    %c0_5 = arith.constant 0 : index
    %6 = vector.load %arg4[%c0_4, %c0_5] : memref<1x32xf32, #tpu.memory_space<vmem>>, vector<1x32xf32>
    tpu.vector_store %arg4[%c0_4, %c0_5], %5 {strides = array<i32>} : memref<1x32xf32, #tpu.memory_space<vmem>>, vector<1x32xf32>,
    return
  }
  func.func @transform_0(%arg0: i32) -> i32 {
    %c0_i32 = arith.constant 0 : i32
    %c0_i32_0 = arith.constant 0 : i32
    return %c0_i32 : i32
  }
  func.func @transform_1(%arg0: i32) -> (i32, i32) {
    %c0_i32 = arith.constant 0 : i32
    %c0_i32_0 = arith.constant 0 : i32
    %c0_i32_1 = arith.constant 0 : i32
    return %c0_i32, %c0_i32_0 : i32, i32
  }
  func.func @transform_2(%arg0: i32) -> (i32, i32) {
    %c0_i32 = arith.constant 0 : i32
    %c0_i32_0 = arith.constant 0 : i32
    return %arg0, %c0_i32 : i32, i32
  }
  func.func @transform_3(%arg0: i32) -> (i32, i32) {
    %c0_i32 = arith.constant 0 : i32
    %c0_i32_0 = arith.constant 0 : i32
    return %arg0, %c0_i32 : i32, i32
  }
}

</mosaic_0001>

<llo_original>
// kernel: calinn_forward.1
$region0: #{calinn_forward.1}
  #allocation0 [shape = 'u32[]', space=smem, size = 0x4, offset = 0x4, fixed_abs, tag = 'smem constant byte address 0x4 - core index']
  #allocation1 [shape = 'u32[144,128]{1,0:T(1,128)}', space=vmem, size = 0x12000, scoped, tag = 'internal scratch']
  #allocation2 [shape = 'f32[1]{0:T(128)S(6)}', space=smem, size = 0x200, scoped, tag = 'scoped memory for calinn_forward.1']
  %s0 = inlined_call_operand.<no memory space> [shape: f32[1], index: 0, kind: input, shape index: {}]
  %s1 = inlined_call_operand.vmem [shape: f32[128,32], index: 1, kind: input, shape index: {}]
  %s2 = inlined_call_operand.vmem [shape: f32[1,128], index: 2, kind: input, shape index: {}]
  %s3 = inlined_call_operand.vmem [shape: f32[1,32], index: 3, kind: output, shape index: {}]
  %s4 = sld [smem:[#allocation0]]
  $region22: #{calinn_forward.1} parent=0
    _
  %s6 = ssub.s32 1, %s4
  %s7 = scalar_select 0, %s6, %s4
  %8 = sst [smem:[#allocation2]] %s0
  // Predicated region
  $region2: #{calinn_forward.1} parent=0 // pred_check
    _
  $region3: #{calinn_forward.1} parent=0 // pred_check_branch
    %10 = sbr.rel (0) target = $region5
  $region4: #{calinn_forward.1} parent=0 // pred_region
    _
  $region5: #{calinn_forward.1} parent=0 // pred_fallthru
    _
  // Predicated region
  $region6: #{calinn_forward.1} parent=0 // pred_check
    _
  $region7: #{calinn_forward.1} parent=0 // pred_check_branch
    %12 = sbr.rel (0) target = $region9
  $region8: #{calinn_forward.1} parent=0 // pred_region
    _
  $region9: #{calinn_forward.1} parent=0 // pred_fallthru
    _
  // Predicated region
  $region10: #{calinn_forward.1} parent=0 // pred_check
    _
  $region11: #{calinn_forward.1} parent=0 // pred_check_branch
    %14 = sbr.rel (0) target = $region13
  $region12: #{calinn_forward.1} parent=0 // pred_region
    _
  $region13: #{calinn_forward.1} parent=0 // pred_fallthru
    _
  %v15 = vld [vmem:[%s2] sm:$0x1]
  %v16 = vld [vmem:[%s1] sm:$0xff]
  %v17 = vld [vmem:[%s1 + $0x8] sm:$0xff]
  %v18 = vld [vmem:[%s1 + $0x10] sm:$0xff]
  %v19 = vld [vmem:[%s1 + $0x18] sm:$0xff]
  %v20 = vld [vmem:[%s1 + $0x20] sm:$0xff]
  %v21 = vld [vmem:[%s1 + $0x28] sm:$0xff]
  %v22 = vld [vmem:[%s1 + $0x30] sm:$0xff]
  %v23 = vld [vmem:[%s1 + $0x38] sm:$0xff]
  %v24 = vld [vmem:[%s1 + $0x40] sm:$0xff]
  %v25 = vld [vmem:[%s1 + $0x48] sm:$0xff]
  %v26 = vld [vmem:[%s1 + $0x50] sm:$0xff]
  %v27 = vld [vmem:[%s1 + $0x58] sm:$0xff]
  %v28 = vld [vmem:[%s1 + $0x60] sm:$0xff]
  %v29 = vld [vmem:[%s1 + $0x68] sm:$0xff]
  %v30 = vld [vmem:[%s1 + $0x70] sm:$0xff]
  %v31 = vld [vmem:[%s1 + $0x78] sm:$0xff]
  %s32 = sld [smem:[#allocation2]]
  %v33 = vstv %s32
  %34 = vmatprep.subr.mxu0 0.0
  %35 = vmatpush1.msra.mxu0 %v16
  %36 = vmatprep.subr.mxu0 0.0
  %37 = vmatpush1.msra.mxu0 %v17
  %38 = vmatprep.subr.mxu0 0.0
  %39 = vmatpush1.msra.mxu0 %v18
  %40 = vmatprep.subr.mxu0 0.0
  %41 = vmatpush1.msra.mxu0 %v19
  %42 = vmatprep.subr.mxu0 0.0
  %43 = vmatpush1.msra.mxu0 %v20
  %44 = vmatprep.subr.mxu0 0.0
  %45 = vmatpush1.msra.mxu0 %v21
  %46 = vmatprep.subr.mxu0 0.0
  %47 = vmatpush1.msra.mxu0 %v22
  %48 = vmatprep.subr.mxu0 0.0
  %49 = vmatpush1.msra.mxu0 %v23
  %50 = vmatprep.subr.mxu0 0.0
  %51 = vmatpush1.msra.mxu0 %v24
  %52 = vmatprep.subr.mxu0 0.0
  %53 = vmatpush1.msra.mxu0 %v25
  %54 = vmatprep.subr.mxu0 0.0
  %55 = vmatpush1.msra.mxu0 %v26
  %56 = vmatprep.subr.mxu0 0.0
  %57 = vmatpush1.msra.mxu0 %v27
  %58 = vmatprep.subr.mxu0 0.0
  %59 = vmatpush1.msra.mxu0 %v28
  %60 = vmatprep.subr.mxu0 0.0
  %61 = vmatpush1.msra.mxu0 %v29
  %62 = vmatprep.subr.mxu0 0.0
  %63 = vmatpush1.msra.mxu0 %v30
  %64 = vmatprep.subr.mxu0 0.0
  %65 = vmatpush1.msra.mxu0 %v31
  %66 = vmatprep.subr.mxu0 0.0
  %67 = vmatpush1.msra.mxu0 0.0
  %68 = vmatprep.subr.mxu0 0.0
  %69 = vmatpush1.msra.mxu0 0.0
  %70 = vmatprep.subr.mxu0 0.0
  %71 = vmatpush1.msra.mxu0 0.0
  %72 = vmatprep.subr.mxu0 0.0
  %73 = vmatpush1.msra.mxu0 0.0
  %74 = vmatprep.subr.mxu0 0.0
  %75 = vmatpush1.msra.mxu0 0.0
  %76 = vmatprep.subr.mxu0 0.0
  %77 = vmatpush1.msra.mxu0 0.0
  %78 = vmatprep.subr.mxu0 0.0
  %79 = vmatpush1.msra.mxu0 0.0
  %80 = vmatprep.subr.mxu0 0.0
  %81 = vmatpush1.msra.mxu0 0.0
  %82 = vmatprep.subr.mxu0 0.0
  %83 = vmatpush1.msra.mxu0 0.0
  %84 = vmatprep.subr.mxu0 0.0
  %85 = vmatpush1.msra.mxu0 0.0
  %86 = vmatprep.subr.mxu0 0.0
  %87 = vmatpush1.msra.mxu0 0.0
  %88 = vmatprep.subr.mxu0 0.0
  %89 = vmatpush1.msra.mxu0 0.0
  %90 = vmatprep.subr.mxu0 0.0
  %91 = vmatpush1.msra.mxu0 0.0
  %92 = vmatprep.subr.mxu0 0.0
  %93 = vmatpush1.msra.mxu0 0.0
  %94 = vmatprep.subr.mxu0 0.0
  %95 = vmatpush1.msra.mxu0 0.0
  %96 = vmatprep.subr.mxu0 0.0
  %97 = vmatpush1.msra.mxu0 0.0
  %98 = vmatprep.mubr.f32.mxu0 0.0
  %99 = vmatmul.mubr.f32.gmra.mrb[0].mxu0 %v15
  %v100 = vpop.f32.mrb[0].mxu0
  %v101 = vadd.f32 %v33, %v100
  %v102 = vpop.f32.mrb[0].mxu0
  %103 = vdwg.mxu0
  %vm104 = vcmask 253952
  %105 = vst.msk [vmem:[%s3] sm:$0x1] %vm104, %v101
  // Predicated region
  $region14: #{calinn_forward.1} parent=0 // pred_check
    _
  $region15: #{calinn_forward.1} parent=0 // pred_check_branch
    %107 = sbr.rel (0) target = $region17
  $region16: #{calinn_forward.1} parent=0 // pred_region
    _
  $region17: #{calinn_forward.1} parent=0 // pred_fallthru
    _
  // Predicated region
  $region18: #{calinn_forward.1} parent=0 // pred_check
    _
  $region19: #{calinn_forward.1} parent=0 // pred_check_branch
    %109 = sbr.rel (0) target = $region21
  $region20: #{calinn_forward.1} parent=0 // pred_region
    _
  $region21: #{calinn_forward.1} parent=0 // pred_fallthru
    _

</llo_original>
